<compile_context>
chip_gen: v5e
topology: v5e:2x2
jax: 0.10.0
libtpu: 0.0.40
codegen_flags: <defaults>
</compile_context>

<pallas_src>
import jax
import jax.numpy as jnp
from jax.experimental import pallas as pl
from jax.experimental.pallas import tpu as pltpu


def _silu(t):
    # x * sigmoid(x), written with exp so it lowers cleanly on the EUP.
    return t * (1.0 / (1.0 + jnp.exp(-t)))


def _pointwise_kernel(x_ref, w_ref, b_ref, y_ref):
    # x_ref: (1, C1, TILE_S)   input tile (spatial on lanes)
    # w_ref: (C_, C1)          cv1 1x1 weight with BN1 scale folded in
    # b_ref: (C_, 1)           BN1 shift
    # y_ref: (1, C_, TILE_S)
    xb = x_ref[0].astype(jnp.float32)                                   # (C1, TILE_S)
    y = jnp.dot(w_ref[...], xb, preferred_element_type=jnp.float32)    # (C_, TILE_S)
    y = y + b_ref[...]
    y_ref[0] = _silu(y).astype(y_ref.dtype)


def _depthwise_concat_kernel(yp_ref, w_ref, b_ref, out_ref):
    # yp_ref:  (1, C_, H+4, W+4)  zero-padded y (pad=2)
    # w_ref:   (25, C_, 1, 1)     depthwise 5x5 taps with BN2 scale folded in
    # b_ref:   (C_, 1, 1)         BN2 shift
    # out_ref: (1, 2*C_, H, W)    channel-concat output [y, cv2(y)]
    c_ = yp_ref.shape[1]
    h = out_ref.shape[2]
    w = out_ref.shape[3]

    yp = yp_ref[0].astype(jnp.float32)            # (C_, H+4, W+4)
    yc = yp[:, 2:h + 2, 2:w + 2]                  # un-padded y -> first concat half

    acc = jnp.zeros((c_, h, w), jnp.float32)
    for i in range(5):                            # 25 taps, fully unrolled (VPU)
        for j in range(5):
            acc = acc + yp[:, i:i + h, j:j + w] * w_ref[i * 5 + j]
    z = _silu(acc + b_ref[...])

    out_ref[0, :c_] = yc.astype(out_ref.dtype)
    out_ref[0, c_:2 * c_] = z.astype(out_ref.dtype)


def _pick_spatial_tile(hw):
    for t in (2048, 1024, 512, 256, 128):
        if hw % t == 0:
            return t
    return hw


def ghost_conv(x, w1, g1, b1, m1, v1, wdw, g2, b2, m2, v2, eps=1e-5):
    """GhostConv forward (BatchNorm in inference/eval mode).

    x:   (N, C1, H, W)
    w1:  (C_, C1, 1, 1)  cv1 1x1 conv weight (bias=False)
    wdw: (C_, 1, 5, 5)   cv2 depthwise conv weight (groups=C_, bias=False)
    g/b/m/v: BatchNorm gamma/beta/running_mean/running_var, shape (C_,), for cv1 (1) and cv2 (2)
    returns (N, 2*C_, H, W)
    """
    n, c1, h, w = x.shape
    c_ = w1.shape[0]
    hw = h * w
    f32 = jnp.float32

    # Fold BN (eval) into per-channel scale/shift; fold the scale into the conv weights.
    s1 = (g1 / jnp.sqrt(v1 + eps)).astype(f32)
    s2 = (g2 / jnp.sqrt(v2 + eps)).astype(f32)
    w1f = w1.reshape(c_, c1).astype(f32) * s1[:, None]                     # (C_, C1)
    b1f = (b1 - m1 * s1).astype(f32).reshape(c_, 1)                        # (C_, 1)
    wdwf = (wdw.reshape(c_, 25).astype(f32) * s2[:, None]).T.reshape(25, c_, 1, 1)
    b2f = (b2 - m2 * s2).astype(f32).reshape(c_, 1, 1)                     # (C_, 1, 1)

    # ---- stage 1: 1x1 conv + BN + SiLU, tiled over (batch, spatial) ----
    tile_s = _pick_spatial_tile(hw)
    x3 = x.reshape(n, c1, hw)                       # free: NCHW is contiguous
    y = pl.pallas_call(
        _pointwise_kernel,
        out_shape=jax.ShapeDtypeStruct((n, c_, hw), f32),
        grid_spec=pltpu.PrefetchScalarGridSpec(
            num_scalar_prefetch=0,
            grid=(n, hw // tile_s),
            in_specs=[
                pl.BlockSpec((1, c1, tile_s), lambda i, s: (i, 0, s)),
                pl.BlockSpec((c_, c1), lambda i, s: (0, 0)),
                pl.BlockSpec((c_, 1), lambda i, s: (0, 0)),
            ],
            out_specs=pl.BlockSpec((1, c_, tile_s), lambda i, s: (i, 0, s)),
        ),
        compiler_params=pltpu.CompilerParams(
            dimension_semantics=("parallel", "parallel")),
    )(x3, w1f, b1f)

    # ---- stage 2: 5x5 depthwise conv + BN + SiLU, fused with the channel concat ----
    # TODO(synk): fuse this zero-pad + halo handling into the kernel (VMEM scratch /
    # halo-tiled H,W blocks) for large feature maps instead of an extra XLA pad pass.
    yp = jnp.pad(y.reshape(n, c_, h, w), ((0, 0), (0, 0), (2, 2), (2, 2)))
    out = pl.pallas_call(
        _depthwise_concat_kernel,
        out_shape=jax.ShapeDtypeStruct((n, 2 * c_, h, w), x.dtype),
        grid_spec=pltpu.PrefetchScalarGridSpec(
            num_scalar_prefetch=0,
            grid=(n,),
            in_specs=[
                pl.BlockSpec((1, c_, h + 4, w + 4), lambda i: (i, 0, 0, 0)),
                pl.BlockSpec((25, c_, 1, 1), lambda i: (0, 0, 0, 0)),
                pl.BlockSpec((c_, 1, 1), lambda i: (0, 0, 0)),
            ],
            out_specs=pl.BlockSpec((1, 2 * c_, h, w), lambda i: (i, 0, 0, 0)),
        ),
        compiler_params=pltpu.CompilerParams(
            dimension_semantics=("parallel",)),
    )(yp, wdwf, b2f)
    return out


if __name__ == "__main__":
    key = jax.random.PRNGKey(0)
    keys = jax.random.split(key, 11)

    # GhostConv(c1=4, c2=8) -> c_ = 4; batch=2, spatial 16x16.
    N, C1, C2, H, W = 2, 4, 8, 16, 16
    C_ = C2 // 2
    EPS = 1e-5

    x = jax.random.normal(keys[0], (N, C1, H, W), dtype=jnp.float32)
    w1 = jax.random.normal(keys[1], (C_, C1, 1, 1), dtype=jnp.float32) * 0.1
    wdw = jax.random.normal(keys[2], (C_, 1, 5, 5), dtype=jnp.float32) * 0.1
    g1 = 1.0 + 0.1 * jax.random.normal(keys[3], (C_,), dtype=jnp.float32)
    b1 = 0.1 * jax.random.normal(keys[4], (C_,), dtype=jnp.float32)
    m1 = 0.1 * jax.random.normal(keys[5], (C_,), dtype=jnp.float32)
    v1 = 1.0 + 0.5 * jax.random.uniform(keys[6], (C_,), dtype=jnp.float32)
    g2 = 1.0 + 0.1 * jax.random.normal(keys[7], (C_,), dtype=jnp.float32)
    b2 = 0.1 * jax.random.normal(keys[8], (C_,), dtype=jnp.float32)
    m2 = 0.1 * jax.random.normal(keys[9], (C_,), dtype=jnp.float32)
    v2 = 1.0 + 0.5 * jax.random.uniform(keys[10], (C_,), dtype=jnp.float32)

    out = ghost_conv(x, w1, g1, b1, m1, v1, wdw, g2, b2, m2, v2, eps=EPS)
    jax.block_until_ready(out)

    # Pure-JAX/XLA reference (same eval-mode BatchNorm math, outside Pallas).
    def bn(t, g, b, m, v):
        return ((t - m[None, :, None, None])
                / jnp.sqrt(v + EPS)[None, :, None, None]
                * g[None, :, None, None] + b[None, :, None, None])

    def silu(t):
        return t * jax.nn.sigmoid(t)

    y_ref = silu(bn(jax.lax.conv_general_dilated(
        x, w1, (1, 1), "VALID",
        dimension_numbers=("NCHW", "OIHW", "NCHW"),
        precision=jax.lax.Precision.HIGHEST), g1, b1, m1, v1))
    z_ref = silu(bn(jax.lax.conv_general_dilated(
        y_ref, wdw, (1, 1), ((2, 2), (2, 2)),
        dimension_numbers=("NCHW", "OIHW", "NCHW"),
        feature_group_count=C_,
        precision=jax.lax.Precision.HIGHEST), g2, b2, m2, v2))
    ref = jnp.concatenate([y_ref, z_ref], axis=1)

    assert out.shape == (N, C2, H, W), out.shape
    err = float(jnp.max(jnp.abs(out - ref)))
    assert err < 2e-3, f"mismatch vs reference: max abs err = {err}"
    print("KERNEL_OK")
</pallas_src>

<mosaic_0001>
module attributes {stable_mosaic.version = 11 : i64} {
  func.func @_pointwise_kernel(%arg0: i32, %arg1: i32, %arg2: memref<1x4x256xf32, #tpu.memory_space<vmem>>, %arg3: memref<4x4xf32, #tpu.memory_space<vmem>>, %arg4: memref<4x1xf32, #tpu.memory_space<vmem>>, %arg5: memref<1x4x256xf32, #tpu.memory_space<vmem>>) attributes {dimension_semantics = [#tpu.dimension_semantics<parallel>, #tpu.dimension_semantics<parallel>], iteration_bounds = array<i64: 2, 1>, scalar_prefetch = 0 : i64, scratch_operands = 0 : i64, tpu.core_type = #tpu.core_type<tc>, window_params = [{transform_indices = @transform_0, window_bounds = array<i64: 1, 4, 256>}, {pipeline_mode = #tpu.pipeline_mode<synchronous>, transform_indices = @transform_1, window_bounds = array<i64: 4, 4>}, {pipeline_mode = #tpu.pipeline_mode<synchronous>, transform_indices = @transform_2, window_bounds = array<i64: 4, 1>}, {transform_indices = @transform_3, window_bounds = array<i64: 1, 4, 256>}]} {
    %c0 = arith.constant 0 : index
    %c0_0 = arith.constant 0 : index
    %c0_1 = arith.constant 0 : index
    %0 = vector.load %arg2[%c0, %c0_0, %c0_1] : memref<1x4x256xf32, #tpu.memory_space<vmem>>, vector<1x4x256xf32>
    %1 = vector.shape_cast %0 : vector<1x4x256xf32> to vector<4x256xf32>
    %c0_2 = arith.constant 0 : index
    %c0_3 = arith.constant 0 : index
    %2 = vector.load %arg3[%c0_2, %c0_3] : memref<4x4xf32, #tpu.memory_space<vmem>>, vector<4x4xf32>
    %cst = arith.constant dense<0.000000e+00> : vector<4x256xf32>
    %3 = tpu.matmul %2, %1, %cst {dimension_numbers = #tpu.dot_dimension_numbers<[1], [0], [0], [1], [0, 0, 1, 1], [], []>} : vector<4x4xf32>, vector<4x256xf32>, vector<4x256xf32> -> vector<4x256xf32>
    %c0_4 = arith.constant 0 : index
    %c0_5 = arith.constant 0 : index
    %4 = vector.load %arg4[%c0_4, %c0_5] : memref<4x1xf32, #tpu.memory_space<vmem>>, vector<4x1xf32>
    %5 = vector.broadcast %4 : vector<4x1xf32> to vector<4x256xf32>
    %6 = arith.addf %3, %5 : vector<4x256xf32>
    %cst_6 = arith.constant 0.000000e+00 : f32
    %7 = vector.broadcast %cst_6 : f32 to vector<4x256xf32>
    %8 = arith.subf %7, %6 : vector<4x256xf32>
    %9 = math.exp %8 : vector<4x256xf32>
    %cst_7 = arith.constant 1.000000e+00 : f32
    %10 = vector.broadcast %cst_7 : f32 to vector<4x256xf32>
    %11 = arith.addf %10, %9 : vector<4x256xf32>
    %cst_8 = arith.constant 1.000000e+00 : f32
    %12 = vector.broadcast %cst_8 : f32 to vector<4x256xf32>
    %13 = arith.divf %12, %11 : vector<4x256xf32>
    %14 = arith.mulf %6, %13 : vector<4x256xf32>
    %c0_9 = arith.constant 0 : index
    %c0_10 = arith.constant 0 : index
    %c0_11 = arith.constant 0 : index
    %15 = vector.load %arg5[%c0_9, %c0_10, %c0_11] : memref<1x4x256xf32, #tpu.memory_space<vmem>>, vector<1x4x256xf32>
    %16 = vector.shape_cast %15 : vector<1x4x256xf32> to vector<4x256xf32>
    %17 = vector.shape_cast %14 : vector<4x256xf32> to vector<1x4x256xf32>
    tpu.vector_store %arg5[%c0_9, %c0_10, %c0_11], %17 {strides = array<i32>} : memref<1x4x256xf32, #tpu.memory_space<vmem>>, vector<1x4x256xf32>,
    return
  }
  func.func @transform_0(%arg0: i32, %arg1: i32) -> (i32, i32, i32) {
    %c0_i32 = arith.constant 0 : i32
    %c0_i32_0 = arith.constant 0 : i32
    return %arg0, %c0_i32, %arg1 : i32, i32, i32
  }
  func.func @transform_1(%arg0: i32, %arg1: i32) -> (i32, i32) {
    %c0_i32 = arith.constant 0 : i32
    %c0_i32_0 = arith.constant 0 : i32
    %c0_i32_1 = arith.constant 0 : i32
    return %c0_i32, %c0_i32_0 : i32, i32
  }
  func.func @transform_2(%arg0: i32, %arg1: i32) -> (i32, i32) {
    %c0_i32 = arith.constant 0 : i32
    %c0_i32_0 = arith.constant 0 : i32
    %c0_i32_1 = arith.constant 0 : i32
    return %c0_i32, %c0_i32_0 : i32, i32
  }
  func.func @transform_3(%arg0: i32, %arg1: i32) -> (i32, i32, i32) {
    %c0_i32 = arith.constant 0 : i32
    %c0_i32_0 = arith.constant 0 : i32
    return %arg0, %c0_i32, %arg1 : i32, i32, i32
  }
}

</mosaic_0001>

<llo_original>
// kernel: tpu_custom_call.1
$region0: #{tpu_custom_call.1}
  #allocation0 [shape = 'u32[]', space=smem, size = 0x4, offset = 0x4, fixed_abs, tag = 'smem constant byte address 0x4 - core index']
  #allocation1 [shape = 'u32[72,128]{1,0:T(1,128)}', space=vmem, size = 0x9000, scoped, tag = 'internal scratch']
  %s0 = inlined_call_operand.hbm [shape: f32[2,4,256], index: 0, kind: input, shape index: {}]
  %s1 = inlined_call_operand.vmem [shape: f32[4,4], index: 1, kind: input, shape index: {}]
  %s2 = inlined_call_operand.vmem [shape: f32[4,1], index: 2, kind: input, shape index: {}]
  %s3 = inlined_call_operand.hbm [shape: f32[2,4,256], index: 3, kind: output, shape index: {}]
  %s4 = sld [smem:[#allocation0]]
  $region49: #{tpu_custom_call.1} parent=0
    _
  %s6 = ssub.s32 1, %s4
  %s7 = scalar_select 0, %s6, %s4
  $region1: #{tpu_custom_call.1} parent=0
    #allocation2 [shape = 'u8[8192]{0}', space=vmem, size = 0x2000, scoped, tag = 'input window, operand 0']
    #allocation3 [shape = 's32[2]{0}', space=sflag, size = 0x8, scoped, tag = 'scoped memory for tpu_custom_call.1']
    #allocation4 [shape = 's32[2]{0}', space=sflag, size = 0x8, scoped, tag = 'scoped memory for tpu_custom_call.1']
    #allocation5 [shape = 'u8[8192]{0}', space=vmem, size = 0x2000, scoped, tag = 'output window, operand 0']
    %8 = vsyncpa [#allocation3], 0
    %s9 = scalar_lea.sflag [#allocation3], 1
    %10 = vsyncpa %s9, 0
    %11 = vsyncpa [#allocation4], 0
    %s12 = scalar_lea.sflag [#allocation4], 1
    %13 = vsyncpa %s12, 0
    loop: start=0, step=1, limit=4
    $region2: #{tpu_custom_call.1} parent=1 // loop_pre_header
      _
    $region3: #{tpu_custom_call.1} parent=1 // loop_header
      %s15 = sphi 0, %s19
      %p16 = scmp.ge.s32.totalorder %s15, 4
      %s22 = sphi 0, %s34
      %s23 = sphi 0, %s30
      %s24 = sphi 0, %s22
      %s25 = sphi 0, %s23
      %s26 = sphi 0, %s24
      %s27 = sphi 0, %s25
      %s39 = sphi 0, %s41
      %s42 = sphi 0, %s39
      %s43 = sphi 0, %s42
      %s59 = sphi 0, %s43
      %s63 = sphi 0, %s63
      %s65 = sphi 0, %s63
      %s66 = sphi 0, %s65
      %s80 = sphi 0, %s66
      %s84 = sphi 0, %s84
      %s86 = sphi 0, %s84
      %s87 = sphi 0, %s86
      %s101 = sphi 0, %s87
      %s109 = sphi 0, %s111
      %s112 = sphi 0, %s109
      %s113 = sphi 0, %s112
      %s129 = sphi 0, %s113
    $region4: #{tpu_custom_call.1} parent=1 // loop_header_branch
      %18 = sbr.rel (%p16) target = $region8
    $region5: #{tpu_custom_call.1} parent=1 // loop_body
      %s20 = ssub.s32 %s15, 1
      %s21 = ssub.s32 %s15, 2
      %s28 = sadd.s32 1, %s23
      %p29 = scmp.ge.s32.totalorder %s28, 1
      %s30 = scalar_select %p29, 0, %s28
      %s31 = sadd.s32 1, %s22
      %s32 = scalar_select %p29, %s31, %s22
      %p33 = scmp.ge.s32.totalorder %s32, 2
      %s34 = scalar_select %p33, 0, %s32
      %s35 = ssub.s32 %s22, %s34
      %s36 = ssub.s32 %s23, %s30
      %s37 = sor.u32 %s35, %s36
      %p38 = scmp.eq.s32.totalorder %s37, 0
      %s40 = sadd.s32 %s39, 1
      %s41 = scalar_select %p38, %s39, %s40
      %p44 = pneg %p38
      %p45 = scmp.eq.s32.totalorder %s15, 1
      %p46 = por %p44, %p45
      %p47 = scmp.ne.s32.totalorder %s39, %s42
      %p48 = scmp.eq.s32.totalorder %s15, 0
      %p49 = por %p47, %p48
      %p50 = scmp.ne.s32.totalorder %s39, %s42
      %p51 = scmp.eq.s32.totalorder %s20, 1
      %p52 = por %p50, %p51
      %p53 = scmp.ne.s32.totalorder %s42, %s43
      %p54 = scmp.eq.s32.totalorder %s20, 0
      %p55 = por %p53, %p54
      %p56 = scmp.ne.s32.totalorder %s42, %s43
      %p57 = scmp.eq.s32.totalorder %s21, 1
      %p58 = por %p56, %p57
      %p60 = scmp.ne.s32.totalorder %s43, %s59
      %p61 = scmp.eq.s32.totalorder %s21, 0
      %p62 = por %p60, %p61
      %s64 = sadd.s32 %s63, 1
      %p67 = scmp.eq.s32.totalorder %s15, 1
      %p68 = scmp.ne.s32.totalorder %s63, %s65
      %p69 = scmp.eq.s32.totalorder %s15, 0
      %p70 = por %p68, %p69
      %p71 = scmp.ne.s32.totalorder %s63, %s65
      %p72 = scmp.eq.s32.totalorder %s20, 1
      %p73 = por %p71, %p72
      %p74 = scmp.ne.s32.totalorder %s65, %s66
      %p75 = scmp.eq.s32.totalorder %s20, 0
      %p76 = por %p74, %p75
      %p77 = scmp.ne.s32.totalorder %s65, %s66
      %p78 = scmp.eq.s32.totalorder %s21, 1
      %p79 = por %p77, %p78
      %p81 = scmp.ne.s32.totalorder %s66, %s80
      %p82 = scmp.eq.s32.totalorder %s21, 0
      %p83 = por %p81, %p82
      %s85 = sadd.s32 %s84, 1
      %p88 = scmp.eq.s32.totalorder %s15, 1
      %p89 = scmp.ne.s32.totalorder %s84, %s86
      %p90 = scmp.eq.s32.totalorder %s15, 0
      %p91 = por %p89, %p90
      %p92 = scmp.ne.s32.totalorder %s84, %s86
      %p93 = scmp.eq.s32.totalorder %s20, 1
      %p94 = por %p92, %p93
      %p95 = scmp.ne.s32.totalorder %s86, %s87
      %p96 = scmp.eq.s32.totalorder %s20, 0
      %p97 = por %p95, %p96
      %p98 = scmp.ne.s32.totalorder %s86, %s87
      %p99 = scmp.eq.s32.totalorder %s21, 1
      %p100 = por %p98, %p99
      %p102 = scmp.ne.s32.totalorder %s87, %s101
      %p103 = scmp.eq.s32.totalorder %s21, 0
      %p104 = por %p102, %p103
      %s105 = ssub.s32 %s22, %s34
      %s106 = ssub.s32 %s23, %s30
      %s107 = sor.u32 %s105, %s106
      %p108 = scmp.eq.s32.totalorder %s107, 0
      %s110 = sadd.s32 %s109, 1
      %s111 = scalar_select %p108, %s109, %s110
      %p114 = pneg %p108
      %p115 = scmp.eq.s32.totalorder %s15, 1
      %p116 = por %p114, %p115
      %p117 = scmp.ne.s32.totalorder %s109, %s112
      %p118 = scmp.eq.s32.totalorder %s15, 0
      %p119 = por %p117, %p118
      %p120 = scmp.ne.s32.totalorder %s109, %s112
      %p121 = scmp.eq.s32.totalorder %s20, 1
      %p122 = por %p120, %p121
      %p123 = scmp.ne.s32.totalorder %s112, %s113
      %p124 = scmp.eq.s32.totalorder %s20, 0
      %p125 = por %p123, %p124
      %p126 = scmp.ne.s32.totalorder %s112, %s113
      %p127 = scmp.eq.s32.totalorder %s21, 1
      %p128 = por %p126, %p127
      %p130 = scmp.ne.s32.totalorder %s113, %s129
      %p131 = scmp.eq.s32.totalorder %s21, 0
      %p132 = por %p130, %p131
      %p133 = scmp.le.s32.totalorder 1, %s15
      %p134 = scmp.lt.s32.totalorder %s15, 3
      %p135 = pnand %p133, %p134
      %p136 = pneg %p135
      // Predicated region
      $region9: #{tpu_custom_call.1} parent=5 // pred_check
        _
      $region10: #{tpu_custom_call.1} parent=5 // pred_check_branch
        %138 = sbr.rel (%p135) target = $region12
      $region11: #{tpu_custom_call.1} parent=5 // pred_region
        %s139 = ssub.s32 %s15, 1
        // Predicated region
        $region13: #{tpu_custom_call.1} parent=11 // pred_check
          %p140 = pneg %p76
        $region14: #{tpu_custom_call.1} parent=11 // pred_check_branch
          %142 = sbr.rel (%p140) target = $region16
        $region15: #{tpu_custom_call.1} parent=11 // pred_region
          _
        $region16: #{tpu_custom_call.1} parent=11 // pred_fallthru
          _
        // Predicated region
        $region17: #{tpu_custom_call.1} parent=11 // pred_check
          %p143 = pneg %p97
        $region18: #{tpu_custom_call.1} parent=11 // pred_check_branch
          %145 = sbr.rel (%p143) target = $region20
        $region19: #{tpu_custom_call.1} parent=11 // pred_region
          _
        $region20: #{tpu_custom_call.1} parent=11 // pred_fallthru
          _
      $region12: #{tpu_custom_call.1} parent=5 // pred_fallthru
        _
      %p146 = scmp.lt.s32.totalorder %s15, 2
      // Predicated region
      $region21: #{tpu_custom_call.1} parent=5 // pred_check
        %p147 = pneg %p146
      $region22: #{tpu_custom_call.1} parent=5 // pred_check_branch
        %149 = sbr.rel (%p147) target = $region24
      $region23: #{tpu_custom_call.1} parent=5 // pred_region
        // Predicated region
        $region25: #{tpu_custom_call.1} parent=23 // pred_check
          %p150 = pneg %p49
        $region26: #{tpu_custom_call.1} parent=23 // pred_check_branch
          %152 = sbr.rel (%p150) target = $region28
        $region27: #{tpu_custom_call.1} parent=23 // pred_region
          %s153 = sand.u32 %s39, 1
          %s154 = scalar_lea.sflag [#allocation3], %s153
          %s155 = sand.u32 %s39, 1
          %s156 = smul.addr %s155, 8
          %s157 = scalar_lea.vmem [#allocation2], %s156
          %s158 = smul.u32 2, %s23
          %160 = vsyncadd %s154, 0
          %s161 = smul.addr %s22, 2
          %s162 = sadd.s32 %s158, %s161
          %s163 = smul.addr %s162, 4
          %s164 = scalar_lea.hbm %s0, %s163
          %s166 = sshll.u32 %s164, 4
          %s167 = int_to_ptr.hbm [resolvable:$true] %s166
          %s168 = sshll.u32 %s157, 4
          %s169 = int_to_ptr.vmem [resolvable:$true] %s168
          %171 = dma.hbm_to_vmem [thread:$0]  %s167, 128, %s169, %s154
        $region28: #{tpu_custom_call.1} parent=23 // pred_fallthru
          _
      $region24: #{tpu_custom_call.1} parent=5 // pred_fallthru
        _
      %p172 = scmp.le.s32.totalorder 1, %s15
      %p173 = scmp.lt.s32.totalorder %s15, 3
      %p174 = pnand %p172, %p173
      %p175 = pneg %p174
      // Predicated region
      $region29: #{tpu_custom_call.1} parent=5 // pred_check
        _
      $region30: #{tpu_custom_call.1} parent=5 // pred_check_branch
        %177 = sbr.rel (%p174) target = $region32
      $region31: #{tpu_custom_call.1} parent=5 // pred_region
        %s178 = ssub.s32 %s15, 1
        %s179 = sand.u32 %s42, 1
        %s180 = scalar_lea.sflag [#allocation3], %s179
        %s181 = sand.u32 %s42, 1
        %s182 = smul.addr %s181, 8
        %s183 = scalar_lea.vmem [#allocation2], %s182
        // Predicated region
        $region33: #{tpu_custom_call.1} parent=31 // pred_check
          %p184 = pneg %p55
        $region34: #{tpu_custom_call.1} parent=31 // pred_check_branch
          %186 = sbr.rel (%p184) target = $region36
        $region35: #{tpu_custom_call.1} parent=31 // pred_region
          %188 = dma.done %s180, 128
        $region36: #{tpu_custom_call.1} parent=31 // pred_fallthru
          _
        %s189 = sand.u32 %s42, 1
        %s190 = scalar_lea.sflag [#allocation3], %s189
        %s191 = sand.u32 %s42, 1
        %s192 = smul.addr %s191, 8
        %s193 = scalar_lea.vmem [#allocation2], %s192
        %p194 = pneg %p55
        %p195 = pneg %p52
        %p196 = pneg %p76
        %p197 = pneg %p73
        %p198 = pneg %p97
        %p199 = pneg %p94
        %p200 = pneg %p125
        %p201 = pneg %p122
        %s202 = sand.u32 %s112, 1
        %s203 = scalar_lea.sflag [#allocation4], %s202
        %s204 = sand.u32 %s112, 1
        %s205 = smul.addr %s204, 8
        %s206 = scalar_lea.vmem [#allocation5], %s205
        %s207 = smul.u32 2, %s25
        %s208 = smul.u32 2, %s25
        %v209 = vld [vmem:[%s183] sm:$0xff]
        %v210 = vld [vmem:[%s1] sm:$0xf]
        %v211 = vld [vmem:[%s2] sm:$0xf]
        %213 = vset.pattern.permute.xlu0 0
        %214 = vperm.xlu0 %213, %v211
        %v215 = vpop.permute.xlu0 %214
        %218 = vst [vmem:[#allocation1] ss:$2 sm:$0xff] %v209
        %v219 = vld.sshfl [vmem:[#allocation1] sm:$0xff pattern:$0x75316420]
        %v220 = vld.sshfl [vmem:[#allocation1 + $0x8] sm:$0xff pattern:$0x75316420]
        %vm221 = vcmask 31744
        %v223 = vsel %vm221, %v210, 0
        %vm225 = vcmask 1043456
        %v226 = vsel %vm225, %v219, 0
        %v228 = vsel %vm225, %v220, 0
        %230 = vmatpush.msra.mxu0 0.0
        %231 = vmatpush.msra.mxu0 0.0
        %232 = vmatpush.msra.mxu0 0.0
        %233 = vmatpush.msra.mxu0 0.0
        %234 = vmatpush.msra.mxu0 0.0
        %235 = vmatpush.msra.mxu0 0.0
        %236 = vmatpush.msra.mxu0 0.0
        %237 = vmatpush.msra.mxu0 0.0
        %238 = vmatpush.msra.mxu0 0.0
        %239 = vmatpush.msra.mxu0 0.0
        %240 = vmatpush.msra.mxu0 0.0
        %241 = vmatpush.msra.mxu0 0.0
        %242 = vmatpush.msra.mxu0 0.0
        %243 = vmatpush.msra.mxu0 0.0
        %244 = vmatpush.msra.mxu0 0.0
        %245 = vmatpush.msra.mxu0 %v226
        %246 = vmatmul.f32.gmra.mxu0 %v223
        %v247 = vpop.f32.mrf.mxu0
        %v248 = vadd.f32 %v215, %v247
        %249 = vdwg.mxu0
        %250 = vmatpush.msra.mxu0 0.0
        %251 = vmatpush.msra.mxu0 0.0
        %252 = vmatpush.msra.mxu0 0.0
        %253 = vmatpush.msra.mxu0 0.0
        %254 = vmatpush.msra.mxu0 0.0
        %255 = vmatpush.msra.mxu0 0.0
        %256 = vmatpush.msra.mxu0 0.0
        %257 = vmatpush.msra.mxu0 0.0
        %258 = vmatpush.msra.mxu0 0.0
        %259 = vmatpush.msra.mxu0 0.0
        %260 = vmatpush.msra.mxu0 0.0
        %261 = vmatpush.msra.mxu0 0.0
        %262 = vmatpush.msra.mxu0 0.0
        %263 = vmatpush.msra.mxu0 0.0
        %264 = vmatpush.msra.mxu0 0.0
        %265 = vmatpush.msra.mxu0 %v228
        %266 = vmatmul.f32.gmra.mxu0 %v223
        %v267 = vpop.f32.mrf.mxu0
        %v268 = vadd.f32 %v215, %v267
        %269 = vdwg.mxu0
        %v270 = vsub.f32 0.0, %v248
        %v271 = vsub.f32 0.0, %v268
        %v272 = vmul.f32 %v270, 1.442695
        %v273 = vpow.pop %v272
        %v274 = vmul.f32 %v271, 1.442695
        %v275 = vpow.pop %v274
        %v276 = vadd.f32 %v273, 1.0
        %v277 = vadd.f32 %v275, 1.0
        %v278 = vrcp.pop %v276
        %v279 = vmul.f32 %v276, %v278
        %v280 = vsub.f32 1.0, %v279
        %v281 = vmul.f32 %v278, %v280
        %v282 = vadd.f32 %v278, %v281
        %vm283 = vweird.f32 %v276
        %vm284 = vweird.f32 %v278
        %vm285 = vmor %vm283, %vm284
        %v286 = vsel %vm285, %v278, %v282
        %v287 = vand.u32 2147483647, %v276
        %vm288 = vcmp.eq.f32.partialorder %v287, 8.507059e+37
        %v289 = vand.u32 %v276, 2147483648
        %v290 = vor.u32 1.1754944e-38, %v289
        %v291 = vsel %vm288, %v290, %v286
        %v292 = vmul.f32 1.0, %v291
        %v293 = vrcp.pop %v277
        %v294 = vmul.f32 %v277, %v293
        %v295 = vsub.f32 1.0, %v294
        %v296 = vmul.f32 %v293, %v295
        %v297 = vadd.f32 %v293, %v296
        %vm298 = vweird.f32 %v277
        %vm299 = vweird.f32 %v293
        %vm300 = vmor %vm298, %vm299
        %v301 = vsel %vm300, %v293, %v297
        %v302 = vand.u32 2147483647, %v277
        %vm303 = vcmp.eq.f32.partialorder %v302, 8.507059e+37
        %v304 = vand.u32 %v277, 2147483648
        %v305 = vor.u32 1.1754944e-38, %v304
        %v306 = vsel %vm303, %v305, %v301
        %v307 = vmul.f32 1.0, %v306
        %v308 = vmul.f32 %v248, %v292
        %v309 = vmul.f32 %v268, %v307
        %v312 = vrot.slane %v309, 4
        %v313 = vsel %vm225, %v308, %v312
        %315 = vst [vmem:[%s206] sm:$0xff] %v313
        %s316 = sand.u32 %s112, 1
        %s317 = scalar_lea.sflag [#allocation4], %s316
        %s318 = sand.u32 %s112, 1
        %s319 = smul.addr %s318, 8
        %s320 = scalar_lea.vmem [#allocation5], %s319
        // Predicated region
        $region37: #{tpu_custom_call.1} parent=31 // pred_check
          %p321 = pneg %p122
        $region38: #{tpu_custom_call.1} parent=31 // pred_check_branch
          %323 = sbr.rel (%p321) target = $region40
        $region39: #{tpu_custom_call.1} parent=31 // pred_region
          %s324 = smul.u32 2, %s25
          %326 = vsyncadd %s317, 0
          %s327 = smul.addr %s24, 2
          %s328 = sadd.s32 %s324, %s327
          %s329 = smul.addr %s328, 4
          %s330 = scalar_lea.hbm %s3, %s329
          %s332 = sshll.u32 %s320, 4
          %s333 = int_to_ptr.vmem [resolvable:$true] %s332
          %s334 = sshll.u32 %s330, 4
          %s335 = int_to_ptr.hbm [resolvable:$true] %s334
          %337 = dma.vmem_to_hbm [thread:$0]  %s333, 128, %s335, %s317
        $region40: #{tpu_custom_call.1} parent=31 // pred_fallthru
          _
      $region32: #{tpu_custom_call.1} parent=5 // pred_fallthru
        _
      %p338 = scmp.le.s32.totalorder 2, %s15
      // Predicated region
      $region41: #{tpu_custom_call.1} parent=5 // pred_check
        %p339 = pneg %p338
      $region42: #{tpu_custom_call.1} parent=5 // pred_check_branch
        %341 = sbr.rel (%p339) target = $region44
      $region43: #{tpu_custom_call.1} parent=5 // pred_region
        %s342 = ssub.s32 %s15, 2
        // Predicated region
        $region45: #{tpu_custom_call.1} parent=43 // pred_check
          %p343 = pneg %p128
        $region46: #{tpu_custom_call.1} parent=43 // pred_check_branch
          %345 = sbr.rel (%p343) target = $region48
        $region47: #{tpu_custom_call.1} parent=43 // pred_region
          %s346 = sand.u32 %s113, 1
          %s347 = scalar_lea.sflag [#allocation4], %s346
          %s348 = sand.u32 %s113, 1
          %s349 = smul.addr %s348, 8
          %s350 = scalar_lea.vmem [#allocation5], %s349
          %352 = dma.done %s347, 128
        $region48: #{tpu_custom_call.1} parent=43 // pred_fallthru
          _
      $region44: #{tpu_custom_call.1} parent=5 // pred_fallthru
        _
    $region6: #{tpu_custom_call.1} parent=1 // loop_footer
      %s19 = sadd.s32 1, %s15
    $region7: #{tpu_custom_call.1} parent=1 // loop_footer_branch
      %14 = sbr.rel target = $region3
    $region8: #{tpu_custom_call.1} parent=1 // loop_exit
      _
    %353 = vsyncpa [#allocation3], 1
    %s354 = scalar_lea.sflag [#allocation3], 1
    %355 = vsyncpa %s354, 1
    %356 = vsyncpa [#allocation4], 1
    %s357 = scalar_lea.sflag [#allocation4], 1
    %358 = vsyncpa %s357, 1

</llo_original>
